<compile_context>
chip_gen: v7x
topology: tpu7x:2x2x1
jax: 0.10.0
libtpu: 0.0.40
codegen_flags: <defaults>
</compile_context>

<pallas_src>
import jax
import jax.numpy as jnp
from jax.experimental import pallas as pl
from jax.experimental.pallas import tpu as pltpu


def _round_up(x, m):
    return ((x + m - 1) // m) * m


def _sublane_multiple(dtype):
    # f32 -> 8, bf16 -> 16, int8/fp8 -> 32 (dtype-native vreg packing).
    return max(8, 32 // jnp.dtype(dtype).itemsize)


def _wn_matmul_kernel(x_ref, wt_ref, s_ref, b_ref, o_ref, acc_ref, ssq_ref):
    # x_ref:   (tm, tk)   input tile
    # wt_ref:  (tk, tn)   transposed-weight tile
    # s_ref:   (1, tn)    weight_scale row (f32)
    # b_ref:   (1, tn)    bias row (f32)
    # o_ref:   (tm, tn)   output tile
    # acc_ref: (tm, tn)   f32 accumulator scratch
    # ssq_ref: (1, tn)    f32 per-column sum-of-squares scratch
    k = pl.program_id(2)

    @pl.when(k == 0)
    def _():
        acc_ref[...] = jnp.zeros_like(acc_ref)
        ssq_ref[...] = jnp.zeros_like(ssq_ref)

    w = wt_ref[...]
    acc_ref[...] += jnp.dot(x_ref[...], w, preferred_element_type=jnp.float32)

    # Fused weight-norm statistics: cheap VPU work hidden under the MXU step.
    wf = w.astype(jnp.float32)
    ssq_ref[...] += jnp.sum(wf * wf, axis=0, keepdims=True)

    @pl.when(k == pl.num_programs(2) - 1)
    def _():
        factor = s_ref[...] * jax.lax.rsqrt(ssq_ref[...])
        o_ref[...] = (acc_ref[...] * factor + b_ref[...]).astype(o_ref.dtype)


def linear_weight_norm(x, weight, bias=None, weight_scale=None, *,
                       tm=512, tn=512, tk=512, matmul_dtype=None):
    """Pallas forward of LinearWeightNorm.

    x:            (batch, in_features)
    weight:       (out_features, in_features)
    bias:         (out_features,) or None
    weight_scale: scalar, (out_features,) / (out_features, 1), or None (=> 1)
    matmul_dtype: optional dtype (e.g. jnp.bfloat16) for the MXU operands;
                  accumulation, norm statistics and epilogue stay float32.
    """
    batch, in_features = x.shape
    out_features, in_w = weight.shape
    assert in_w == in_features
    out_dtype = x.dtype
    mm_dtype = matmul_dtype if matmul_dtype is not None else x.dtype

    # ---- tile sizes, clamped to the (padded) problem, layout-aligned ----
    sub = _sublane_multiple(mm_dtype)
    tm_e = _round_up(min(tm, _round_up(batch, sub)), sub)
    tn_e = _round_up(min(tn, _round_up(out_features, 128)), 128)
    tk_e = _round_up(min(tk, _round_up(in_features, 128)), 128)
    batch_p = _round_up(batch, tm_e)
    out_p = _round_up(out_features, tn_e)
    in_p = _round_up(in_features, tk_e)

    # v7x megacore: with a single batch tile, expose >=2 output tiles so both
    # TensorCores get "parallel" work (harmless on single-core v5e/v6e).
    if batch_p // tm_e == 1 and out_p // tn_e < 2 and tn_e > 128 and (tn_e // 2) % 128 == 0:
        new_tn = tn_e // 2
        new_out_p = _round_up(out_features, new_tn)
        if new_out_p // new_tn >= 2:
            tn_e, out_p = new_tn, new_out_p

    # ---- cast (before transpose) and pad operands once in the wrapper ----
    x_p = x.astype(mm_dtype) if x.dtype != mm_dtype else x
    if batch_p > batch or in_p > in_features:
        x_p = jnp.pad(x_p, ((0, batch_p - batch), (0, in_p - in_features)))

    w_p = weight.astype(mm_dtype) if weight.dtype != mm_dtype else weight
    if in_p > in_features:
        w_p = jnp.pad(w_p, ((0, 0), (0, in_p - in_features)))          # zeros: exact
    if out_p > out_features:
        w_p = jnp.pad(w_p, ((0, out_p - out_features), (0, 0)),
                      constant_values=1.0)                             # finite norm; sliced off
    w_t = w_p.T  # (in_p, out_p): one-time transpose so the MXU sees plain (K, N)

    if weight_scale is None:
        scale_row = jnp.ones((1, out_p), dtype=jnp.float32)
    else:
        ws = jnp.asarray(weight_scale, dtype=jnp.float32)
        scale_row = jnp.broadcast_to(ws.reshape(1, -1), (1, out_features))
        if out_p > out_features:
            scale_row = jnp.pad(scale_row, ((0, 0), (0, out_p - out_features)),
                                constant_values=1.0)

    if bias is None:
        bias_row = jnp.zeros((1, out_p), dtype=jnp.float32)
    else:
        bias_row = jnp.reshape(bias.astype(jnp.float32), (1, out_features))
        if out_p > out_features:
            bias_row = jnp.pad(bias_row, ((0, 0), (0, out_p - out_features)))

    # ---- VMEM budget: only raise the scoped limit when the tiles need it ----
    mm_item = jnp.dtype(mm_dtype).itemsize
    out_item = jnp.dtype(out_dtype).itemsize
    vmem_est = (2 * tm_e * tk_e * mm_item      # x, double-buffered
                + 2 * tk_e * tn_e * mm_item    # weight.T, double-buffered
                + 2 * tm_e * tn_e * out_item   # output, double-buffered
                + tm_e * tn_e * 4              # f32 accumulator scratch
                + 8 * tn_e * 4)                # scale/bias/ssq rows
    vmem_limit = None
    if vmem_est > 12 * 1024 * 1024:
        # Cap at 48 MiB so a v7x (64 MiB physical VMEM) config never overcommits.
        vmem_limit = int(min(vmem_est * 3 // 2, 48 * 1024 * 1024))

    # ---- fused tiled matmul + weight-norm epilogue ----
    grid = (batch_p // tm_e, out_p // tn_e, in_p // tk_e)
    y_p = pl.pallas_call(
        _wn_matmul_kernel,
        out_shape=jax.ShapeDtypeStruct((batch_p, out_p), out_dtype),
        grid_spec=pltpu.PrefetchScalarGridSpec(
            num_scalar_prefetch=0,
            grid=grid,
            in_specs=[
                pl.BlockSpec((tm_e, tk_e), lambda i, j, k: (i, k)),  # x tile
                pl.BlockSpec((tk_e, tn_e), lambda i, j, k: (k, j)),  # weight.T tile
                pl.BlockSpec((1, tn_e), lambda i, j, k: (0, j)),     # weight_scale row
                pl.BlockSpec((1, tn_e), lambda i, j, k: (0, j)),     # bias row
            ],
            out_specs=pl.BlockSpec((tm_e, tn_e), lambda i, j, k: (i, j)),
            scratch_shapes=[
                pltpu.VMEM((tm_e, tn_e), jnp.float32),   # matmul accumulator
                pltpu.VMEM((1, tn_e), jnp.float32),      # sum-of-squares accumulator
            ],
        ),
        compiler_params=pltpu.CompilerParams(
            dimension_semantics=("parallel", "parallel", "arbitrary"),
            vmem_limit_bytes=vmem_limit),
    )(x_p, w_t, scale_row, bias_row)

    return y_p[:batch, :out_features]


def linear_weight_norm_ref(x, weight, bias, weight_scale):
    w = weight * weight_scale / jnp.sqrt(jnp.sum(weight ** 2, axis=1, keepdims=True))
    y = jnp.matmul(x, w.T, precision=jax.lax.Precision.HIGHEST)
    if bias is not None:
        y = y + bias
    return y


if __name__ == "__main__":
    key = jax.random.PRNGKey(0)
    k_x, k_w = jax.random.split(key)

    batch, in_features, out_features = 16, 32, 64
    weight_init_stdv = 0.1

    # Deterministic parameter init mirroring the module's __init__:
    #   weight = randn(out, in) * 0.1 ; bias = zeros(out) ; weight_scale=None -> 1
    x = jax.random.normal(k_x, (batch, in_features), dtype=jnp.float32)
    weight = jax.random.normal(k_w, (out_features, in_features),
                               dtype=jnp.float32) * weight_init_stdv
    bias = jnp.zeros((out_features,), dtype=jnp.float32)
    weight_scale = None  # module default -> scalar 1

    out = linear_weight_norm(x, weight, bias, weight_scale)
    out = jax.block_until_ready(out)

    ref = linear_weight_norm_ref(x, weight, bias, 1.0)
    assert out.shape == (batch, out_features)
    assert out.dtype == x.dtype
    assert jnp.allclose(out, ref, atol=1e-4, rtol=1e-4), "mismatch vs reference"

    print("KERNEL_OK")
</pallas_src>

<mosaic_0001>
module attributes {stable_mosaic.version = 11 : i64} {
  func.func @_wn_matmul_kernel(%arg0: i32, %arg1: i32, %arg2: i32, %arg3: memref<16x128xf32, #tpu.memory_space<vmem>>, %arg4: memref<128x128xf32, #tpu.memory_space<vmem>>, %arg5: memref<1x128xf32, #tpu.memory_space<vmem>>, %arg6: memref<1x128xf32, #tpu.memory_space<vmem>>, %arg7: memref<16x128xf32, #tpu.memory_space<vmem>>, %arg8: memref<16x128xf32, #tpu.memory_space<vmem>>, %arg9: memref<1x128xf32, #tpu.memory_space<vmem>>) attributes {dimension_semantics = [#tpu.dimension_semantics<parallel>, #tpu.dimension_semantics<parallel>, #tpu.dimension_semantics<arbitrary>], iteration_bounds = array<i64: 1, 1, 1>, scalar_prefetch = 0 : i64, scratch_operands = 2 : i64, tpu.core_type = #tpu.core_type<tc>, window_params = [{transform_indices = @transform_0, window_bounds = array<i64: 16, 128>}, {transform_indices = @transform_1, window_bounds = array<i64: 128, 128>}, {transform_indices = @transform_2, window_bounds = array<i64: 1, 128>}, {transform_indices = @transform_3, window_bounds = array<i64: 1, 128>}, {transform_indices = @transform_4, window_bounds = array<i64: 16, 128>}]} {
    %c0_i32 = arith.constant 0 : i32
    %0 = arith.cmpi eq, %arg2, %c0_i32 : i32
    %1 = arith.extui %0 : i1 to i32
    %c0_i32_0 = arith.constant 0 : i32
    %2 = arith.cmpi ne, %1, %c0_i32_0 : i32
    scf.if %2 {
      %cst_15 = arith.constant 0.000000e+00 : f32
      %18 = vector.broadcast %cst_15 : f32 to vector<16x128xf32>
      %c0_16 = arith.constant 0 : index
      %c0_17 = arith.constant 0 : index
      %19 = vector.load %arg8[%c0_16, %c0_17] : memref<16x128xf32, #tpu.memory_space<vmem>>, vector<16x128xf32>
      tpu.vector_store %arg8[%c0_16, %c0_17], %18 {strides = array<i32>} : memref<16x128xf32, #tpu.memory_space<vmem>>, vector<16x128xf32>,
      %cst_18 = arith.constant 0.000000e+00 : f32
      %20 = vector.broadcast %cst_18 : f32 to vector<1x128xf32>
      %c0_19 = arith.constant 0 : index
      %c0_20 = arith.constant 0 : index
      %21 = vector.load %arg9[%c0_19, %c0_20] : memref<1x128xf32, #tpu.memory_space<vmem>>, vector<1x128xf32>
      tpu.vector_store %arg9[%c0_19, %c0_20], %20 {strides = array<i32>} : memref<1x128xf32, #tpu.memory_space<vmem>>, vector<1x128xf32>,
    } else {
    }
    %c0 = arith.constant 0 : index
    %c0_1 = arith.constant 0 : index
    %3 = vector.load %arg4[%c0, %c0_1] : memref<128x128xf32, #tpu.memory_space<vmem>>, vector<128x128xf32>
    %c0_2 = arith.constant 0 : index
    %c0_3 = arith.constant 0 : index
    %4 = vector.load %arg8[%c0_2, %c0_3] : memref<16x128xf32, #tpu.memory_space<vmem>>, vector<16x128xf32>
    %c0_4 = arith.constant 0 : index
    %c0_5 = arith.constant 0 : index
    %5 = vector.load %arg3[%c0_4, %c0_5] : memref<16x128xf32, #tpu.memory_space<vmem>>, vector<16x128xf32>
    %cst = arith.constant dense<0.000000e+00> : vector<16x128xf32>
    %6 = tpu.matmul %5, %3, %cst {dimension_numbers = #tpu.dot_dimension_numbers<[1], [0], [0], [1], [0, 0, 1, 1], [], []>} : vector<16x128xf32>, vector<128x128xf32>, vector<16x128xf32> -> vector<16x128xf32>
    %7 = arith.addf %4, %6 : vector<16x128xf32>
    %c0_6 = arith.constant 0 : index
    %c0_7 = arith.constant 0 : index
    %8 = vector.load %arg8[%c0_6, %c0_7] : memref<16x128xf32, #tpu.memory_space<vmem>>, vector<16x128xf32>
    tpu.vector_store %arg8[%c0_6, %c0_7], %7 {strides = array<i32>} : memref<16x128xf32, #tpu.memory_space<vmem>>, vector<16x128xf32>,
    %c0_8 = arith.constant 0 : index
    %c0_9 = arith.constant 0 : index
    %9 = vector.load %arg9[%c0_8, %c0_9] : memref<1x128xf32, #tpu.memory_space<vmem>>, vector<1x128xf32>
    %10 = arith.mulf %3, %3 : vector<128x128xf32>
    %cst_10 = arith.constant dense<0.000000e+00> : vector<128xf32>
    %11 = vector.multi_reduction <add>, %10, %cst_10 [0] : vector<128x128xf32> to vector<128xf32>
    %12 = vector.shape_cast %11 : vector<128xf32> to vector<1x128xf32>
    %13 = arith.addf %9, %12 : vector<1x128xf32>
    %c0_11 = arith.constant 0 : index
    %c0_12 = arith.constant 0 : index
    %14 = vector.load %arg9[%c0_11, %c0_12] : memref<1x128xf32, #tpu.memory_space<vmem>>, vector<1x128xf32>
    tpu.vector_store %arg9[%c0_11, %c0_12], %13 {strides = array<i32>} : memref<1x128xf32, #tpu.memory_space<vmem>>, vector<1x128xf32>,
    %c0_i32_13 = arith.constant 0 : i32
    %15 = arith.cmpi eq, %arg2, %c0_i32_13 : i32
    %16 = arith.extui %15 : i1 to i32
    %c0_i32_14 = arith.constant 0 : i32
    %17 = arith.cmpi ne, %16, %c0_i32_14 : i32
    scf.if %17 {
      %c0_15 = arith.constant 0 : index
      %c0_16 = arith.constant 0 : index
      %18 = vector.load %arg5[%c0_15, %c0_16] : memref<1x128xf32, #tpu.memory_space<vmem>>, vector<1x128xf32>
      %c0_17 = arith.constant 0 : index
      %c0_18 = arith.constant 0 : index
      %19 = vector.load %arg9[%c0_17, %c0_18] : memref<1x128xf32, #tpu.memory_space<vmem>>, vector<1x128xf32>
      %20 = math.rsqrt %19 : vector<1x128xf32>
      %21 = arith.mulf %18, %20 : vector<1x128xf32>
      %c0_19 = arith.constant 0 : index
      %c0_20 = arith.constant 0 : index
      %22 = vector.load %arg8[%c0_19, %c0_20] : memref<16x128xf32, #tpu.memory_space<vmem>>, vector<16x128xf32>
      %23 = vector.broadcast %21 : vector<1x128xf32> to vector<16x128xf32>
      %24 = arith.mulf %22, %23 : vector<16x128xf32>
      %c0_21 = arith.constant 0 : index
      %c0_22 = arith.constant 0 : index
      %25 = vector.load %arg6[%c0_21, %c0_22] : memref<1x128xf32, #tpu.memory_space<vmem>>, vector<1x128xf32>
      %26 = vector.broadcast %25 : vector<1x128xf32> to vector<16x128xf32>
      %27 = arith.addf %24, %26 : vector<16x128xf32>
      %c0_23 = arith.constant 0 : index
      %c0_24 = arith.constant 0 : index
      %28 = vector.load %arg7[%c0_23, %c0_24] : memref<16x128xf32, #tpu.memory_space<vmem>>, vector<16x128xf32>
      tpu.vector_store %arg7[%c0_23, %c0_24], %27 {strides = array<i32>} : memref<16x128xf32, #tpu.memory_space<vmem>>, vector<16x128xf32>,
    } else {
    }
    return
  }
  func.func @transform_0(%arg0: i32, %arg1: i32, %arg2: i32) -> (i32, i32) {
    %c0_i32 = arith.constant 0 : i32
    return %arg0, %arg2 : i32, i32
  }
  func.func @transform_1(%arg0: i32, %arg1: i32, %arg2: i32) -> (i32, i32) {
    %c0_i32 = arith.constant 0 : i32
    return %arg2, %arg1 : i32, i32
  }
  func.func @transform_2(%arg0: i32, %arg1: i32, %arg2: i32) -> (i32, i32) {
    %c0_i32 = arith.constant 0 : i32
    %c0_i32_0 = arith.constant 0 : i32
    return %c0_i32, %arg1 : i32, i32
  }
  func.func @transform_3(%arg0: i32, %arg1: i32, %arg2: i32) -> (i32, i32) {
    %c0_i32 = arith.constant 0 : i32
    %c0_i32_0 = arith.constant 0 : i32
    return %c0_i32, %arg1 : i32, i32
  }
  func.func @transform_4(%arg0: i32, %arg1: i32, %arg2: i32) -> (i32, i32) {
    %c0_i32 = arith.constant 0 : i32
    return %arg0, %arg1 : i32, i32
  }
}

</mosaic_0001>

<llo_original>
// kernel: tpu_custom_call.1
$region0: #{tpu_custom_call.1}
  #allocation0 [shape = 'u32[]', space=smem, size = 0x4, offset = 0x4, fixed_abs, tag = 'smem constant byte address 0x4 - core index']
  #allocation1 [shape = 'u32[144,128]{1,0:T(1,128)}', space=vmem, size = 0x12000, scoped, tag = 'internal scratch']
  #allocation2 [shape = 'f32[16,128]{1,0:T(8,128)}', space=vmem, size = 0x2000, scoped, tag = 'scratch operand']
  #allocation3 [shape = 'f32[1,128]{1,0:T(1,128)}', space=vmem, size = 0x200, scoped, tag = 'scratch operand']
  %s0 = inlined_call_operand.hbm [shape: f32[16,128], index: 0, kind: input, shape index: {}]
  %s1 = inlined_call_operand.hbm [shape: f32[128,128], index: 1, kind: input, shape index: {}]
  %s2 = inlined_call_operand.vmem [shape: f32[1,128], index: 2, kind: input, shape index: {}]
  %s3 = inlined_call_operand.vmem [shape: f32[1,128], index: 3, kind: input, shape index: {}]
  %s4 = inlined_call_operand.hbm [shape: f32[16,128], index: 4, kind: output, shape index: {}]
  %s5 = sld [smem:[#allocation0]]
  $region42: #{tpu_custom_call.1} parent=0
    _
  %s7 = ssub.s32 1, %s5
  %s8 = scalar_select 0, %s7, %s5
  $region1: #{tpu_custom_call.1} parent=0
    #allocation4 [shape = 'u8[8192]{0}', space=vmem, size = 0x2000, scoped, tag = 'input window, operand 0, single buffered']
    #allocation5 [shape = 's32[1]{0}', space=sflag, size = 0x4, scoped, tag = 'scoped memory for tpu_custom_call.1']
    #allocation6 [shape = 's32[1]{0}', space=sflag, size = 0x4, scoped, tag = 'scoped memory for tpu_custom_call.1']
    #allocation7 [shape = 'u8[65536]{0}', space=vmem, size = 0x10000, scoped, tag = 'input window, operand 1, single buffered']
    #allocation8 [shape = 's32[1]{0}', space=sflag, size = 0x4, scoped, tag = 'scoped memory for tpu_custom_call.1']
    #allocation9 [shape = 'u8[8192]{0}', space=vmem, size = 0x2000, scoped, tag = 'output window, operand 0, single buffered']
    %9 = vsyncpa [#allocation5], 0
    %10 = vsyncpa [#allocation8], 0
    %11 = vsyncpa [#allocation6], 0
    // Predicated region
    $region2: #{tpu_custom_call.1} parent=1 // pred_check
      _
    $region3: #{tpu_custom_call.1} parent=1 // pred_check_branch
      %13 = sbr.rel (0) target = $region5
    $region4: #{tpu_custom_call.1} parent=1 // pred_region
      %s15 = ssub.s32 256, 256
      %16 = vsyncadd [#allocation5], %s15
      %s17 = sshll.u32 [#allocation4], 4
      %s18 = int_to_ptr.vmem [resolvable:$true] %s17
      %23 = dma.hbm_to_vmem [thread:$0]  %s0, 256, %s18, [#allocation5], 128, 128, 8
    $region5: #{tpu_custom_call.1} parent=1 // pred_fallthru
      _
    // Predicated region
    $region6: #{tpu_custom_call.1} parent=1 // pred_check
      _
    $region7: #{tpu_custom_call.1} parent=1 // pred_check_branch
      %25 = sbr.rel (0) target = $region9
    $region8: #{tpu_custom_call.1} parent=1 // pred_region
      %s27 = ssub.s32 2048, 2048
      %28 = vsyncadd [#allocation8], %s27
      %s29 = sshll.u32 [#allocation7], 4
      %s30 = int_to_ptr.vmem [resolvable:$true] %s29
      %35 = dma.hbm_to_vmem [thread:$0]  %s1, 2048, %s30, [#allocation8], 128, 128, 8
    $region9: #{tpu_custom_call.1} parent=1 // pred_fallthru
      _
    // Predicated region
    $region10: #{tpu_custom_call.1} parent=1 // pred_check
      _
    $region11: #{tpu_custom_call.1} parent=1 // pred_check_branch
      %37 = sbr.rel (0) target = $region13
    $region12: #{tpu_custom_call.1} parent=1 // pred_region
      _
    $region13: #{tpu_custom_call.1} parent=1 // pred_fallthru
      _
    // Predicated region
    $region14: #{tpu_custom_call.1} parent=1 // pred_check
      _
    $region15: #{tpu_custom_call.1} parent=1 // pred_check_branch
      %39 = sbr.rel (0) target = $region17
    $region16: #{tpu_custom_call.1} parent=1 // pred_region
      _
    $region17: #{tpu_custom_call.1} parent=1 // pred_fallthru
      _
    // Predicated region
    $region18: #{tpu_custom_call.1} parent=1 // pred_check
      _
    $region19: #{tpu_custom_call.1} parent=1 // pred_check_branch
      %41 = sbr.rel (0) target = $region21
    $region20: #{tpu_custom_call.1} parent=1 // pred_region
      %42 = dma.done [#allocation5], 256
    $region21: #{tpu_custom_call.1} parent=1 // pred_fallthru
      _
    // Predicated region
    $region22: #{tpu_custom_call.1} parent=1 // pred_check
      _
    $region23: #{tpu_custom_call.1} parent=1 // pred_check_branch
      %44 = sbr.rel (0) target = $region25
    $region24: #{tpu_custom_call.1} parent=1 // pred_region
      %45 = dma.done [#allocation8], 2048
    $region25: #{tpu_custom_call.1} parent=1 // pred_fallthru
      _
    %p46 = scmp.eq.s32.totalorder 0, 0
    // Predicated region
    $region26: #{tpu_custom_call.1} parent=1 // pred_check
      %p47 = pneg %p46
    $region27: #{tpu_custom_call.1} parent=1 // pred_check_branch
      %49 = sbr.rel (%p47) target = $region29
    $region28: #{tpu_custom_call.1} parent=1 // pred_region
      %50 = vst [vmem:[#allocation2] sm:$0xff] 0.0
      %51 = vst [vmem:[#allocation2 + $0x8] sm:$0xff] 0.0
      %52 = vst [vmem:[#allocation3] sm:$0x1] 0.0
    $region29: #{tpu_custom_call.1} parent=1 // pred_fallthru
      _
    %v53 = vld [vmem:[#allocation7] sm:$0xff]
    %v54 = vld [vmem:[#allocation7 + $0x8] sm:$0xff]
    %v55 = vld [vmem:[#allocation7 + $0x10] sm:$0xff]
    %v56 = vld [vmem:[#allocation7 + $0x18] sm:$0xff]
    %v57 = vld [vmem:[#allocation7 + $0x20] sm:$0xff]
    %v58 = vld [vmem:[#allocation7 + $0x28] sm:$0xff]
    %v59 = vld [vmem:[#allocation7 + $0x30] sm:$0xff]
    %v60 = vld [vmem:[#allocation7 + $0x38] sm:$0xff]
    %v61 = vld [vmem:[#allocation7 + $0x40] sm:$0xff]
    %v62 = vld [vmem:[#allocation7 + $0x48] sm:$0xff]
    %v63 = vld [vmem:[#allocation7 + $0x50] sm:$0xff]
    %v64 = vld [vmem:[#allocation7 + $0x58] sm:$0xff]
    %v65 = vld [vmem:[#allocation7 + $0x60] sm:$0xff]
    %v66 = vld [vmem:[#allocation7 + $0x68] sm:$0xff]
    %v67 = vld [vmem:[#allocation7 + $0x70] sm:$0xff]
    %v68 = vld [vmem:[#allocation7 + $0x78] sm:$0xff]
    %v69 = vld [vmem:[#allocation2] sm:$0xff]
    %v70 = vld [vmem:[#allocation2 + $0x8] sm:$0xff]
    %v71 = vld [vmem:[#allocation4] sm:$0xff]
    %v72 = vld [vmem:[#allocation4 + $0x8] sm:$0xff]
    %73 = vmatprep.subr.mxu0 0.0
    %74 = vmatpush1.msra.mxu0 %v53
    %75 = vmatprep.subr.mxu0 0.0
    %76 = vmatpush1.msra.mxu0 %v54
    %77 = vmatprep.subr.mxu0 0.0
    %78 = vmatpush1.msra.mxu0 %v55
    %79 = vmatprep.subr.mxu0 0.0
    %80 = vmatpush1.msra.mxu0 %v56
    %81 = vmatprep.subr.mxu0 0.0
    %82 = vmatpush1.msra.mxu0 %v57
    %83 = vmatprep.subr.mxu0 0.0
    %84 = vmatpush1.msra.mxu0 %v58
    %85 = vmatprep.subr.mxu0 0.0
    %86 = vmatpush1.msra.mxu0 %v59
    %87 = vmatprep.subr.mxu0 0.0
    %88 = vmatpush1.msra.mxu0 %v60
    %89 = vmatprep.subr.mxu0 0.0
    %90 = vmatpush1.msra.mxu0 %v61
    %91 = vmatprep.subr.mxu0 0.0
    %92 = vmatpush1.msra.mxu0 %v62
    %93 = vmatprep.subr.mxu0 0.0
    %94 = vmatpush1.msra.mxu0 %v63
    %95 = vmatprep.subr.mxu0 0.0
    %96 = vmatpush1.msra.mxu0 %v64
    %97 = vmatprep.subr.mxu0 0.0
    %98 = vmatpush1.msra.mxu0 %v65
    %99 = vmatprep.subr.mxu0 0.0
    %100 = vmatpush1.msra.mxu0 %v66
    %101 = vmatprep.subr.mxu0 0.0
    %102 = vmatpush1.msra.mxu0 %v67
    %103 = vmatprep.subr.mxu0 0.0
    %104 = vmatpush1.msra.mxu0 %v68
    %105 = vmatprep.subr.mxu0 0.0
    %106 = vmatpush1.msra.mxu0 0.0
    %107 = vmatprep.subr.mxu0 0.0
    %108 = vmatpush1.msra.mxu0 0.0
    %109 = vmatprep.subr.mxu0 0.0
    %110 = vmatpush1.msra.mxu0 0.0
    %111 = vmatprep.subr.mxu0 0.0
    %112 = vmatpush1.msra.mxu0 0.0
    %113 = vmatprep.subr.mxu0 0.0
    %114 = vmatpush1.msra.mxu0 0.0
    %115 = vmatprep.subr.mxu0 0.0
    %116 = vmatpush1.msra.mxu0 0.0
    %117 = vmatprep.subr.mxu0 0.0
    %118 = vmatpush1.msra.mxu0 0.0
    %119 = vmatprep.subr.mxu0 0.0
    %120 = vmatpush1.msra.mxu0 0.0
    %121 = vmatprep.subr.mxu0 0.0
    %122 = vmatpush1.msra.mxu0 0.0
    %123 = vmatprep.subr.mxu0 0.0
    %124 = vmatpush1.msra.mxu0 0.0
    %125 = vmatprep.subr.mxu0 0.0
    %126 = vmatpush1.msra.mxu0 0.0
    %127 = vmatprep.subr.mxu0 0.0
    %128 = vmatpush1.msra.mxu0 0.0
    %129 = vmatprep.subr.mxu0 0.0
    %130 = vmatpush1.msra.mxu0 0.0
    %131 = vmatprep.subr.mxu0 0.0
    %132 = vmatpush1.msra.mxu0 0.0
    %133 = vmatprep.subr.mxu0 0.0
    %134 = vmatpush1.msra.mxu0 0.0
    %135 = vmatprep.subr.mxu0 0.0
    %136 = vmatpush1.msra.mxu0 0.0
    %137 = vmatprep.mubr.f32.mxu0 0.0
    %138 = vmatmul.mubr.f32.gmra.mrb[0].mxu0 %v71
    %v139 = vpop.f32.mrb[0].mxu0
    %v140 = vadd.f32 0.0, %v139
    %v141 = vpop.f32.mrb[0].mxu0
    %142 = vmatprep.mubr.f32.mxu0 0.0
    %143 = vmatmul.mubr.f32.gmra.mrb[0].mxu0 %v72
    %v144 = vpop.f32.mrb[0].mxu0
    %v145 = vadd.f32 0.0, %v144
    %v146 = vpop.f32.mrb[0].mxu0
    %147 = vdwg.mxu0
    %v148 = vadd.f32 %v69, %v140
    %v149 = vadd.f32 %v70, %v145
    %150 = vst [vmem:[#allocation2] sm:$0xff] %v148
    %151 = vst [vmem:[#allocation2 + $0x8] sm:$0xff] %v149
    %v152 = vld [vmem:[#allocation3] sm:$0x1]
    %v153 = vmul.f32 %v53, %v53
    %v154 = vmul.f32 %v54, %v54
    %v155 = vmul.f32 %v55, %v55
    %v156 = vmul.f32 %v56, %v56
    %v157 = vmul.f32 %v57, %v57
    %v158 = vmul.f32 %v58, %v58
    %v159 = vmul.f32 %v59, %v59
    %v160 = vmul.f32 %v60, %v60
    %v161 = vmul.f32 %v61, %v61
    %v162 = vmul.f32 %v62, %v62
    %v163 = vmul.f32 %v63, %v63
    %v164 = vmul.f32 %v64, %v64
    %v165 = vmul.f32 %v65, %v65
    %v166 = vmul.f32 %v66, %v66
    %v167 = vmul.f32 %v67, %v67
    %v168 = vmul.f32 %v68, %v68
    %v169 = vadd.f32 %v153, %v154
    %v170 = vadd.f32 %v169, %v155
    %v171 = vadd.f32 %v170, %v156
    %v172 = vadd.f32 %v171, %v157
    %v173 = vadd.f32 %v172, %v158
    %v174 = vadd.f32 %v173, %v159
    %v175 = vadd.f32 %v174, %v160
    %v176 = vadd.f32 %v175, %v161
    %v177 = vadd.f32 %v176, %v162
    %v178 = vadd.f32 %v177, %v163
    %v179 = vadd.f32 %v178, %v164
    %v180 = vadd.f32 %v179, %v165
    %v181 = vadd.f32 %v180, %v166
    %v182 = vadd.f32 %v181, %v167
    %v183 = vadd.f32 %v182, %v168
    %v184 = vrot.slane %v183, 4
    %v185 = vadd.f32 %v183, %v184
    %v186 = vrot.slane %v185, 2
    %v187 = vadd.f32 %v185, %v186
    %v188 = vrot.slane %v187, 1
    %v189 = vadd.f32 %v187, %v188
    %v190 = vadd.f32 %v152, %v189
    %191 = vst [vmem:[#allocation3] sm:$0x1] %v190
    // Predicated region
    $region30: #{tpu_custom_call.1} parent=1 // pred_check
      %p192 = pneg %p46
    $region31: #{tpu_custom_call.1} parent=1 // pred_check_branch
      %194 = sbr.rel (%p192) target = $region33
    $region32: #{tpu_custom_call.1} parent=1 // pred_region
      %v195 = vld [vmem:[%s2] sm:$0x1]
      %v196 = vld [vmem:[#allocation3] sm:$0x1]
      %v197 = vrsqrt.pop %v196
      %v198 = vmul.f32 %v195, %v197
      %v199 = vld [vmem:[#allocation2] sm:$0xff]
      %v200 = vld [vmem:[#allocation2 + $0x8] sm:$0xff]
      %v202 = vlaneseq
      %v203 = vshrl.u32 %v202, 7
      %v204 = vsub.s32 0, %v203
      %v205 = vrot.slane %v198, %v204
      %v207 = vmul.f32 %v199, %v205
      %v208 = vmul.f32 %v200, %v205
      %v209 = vld [vmem:[%s3] sm:$0x1]
      %v211 = vlaneseq
      %v212 = vshrl.u32 %v211, 7
      %v213 = vsub.s32 0, %v212
      %v214 = vrot.slane %v209, %v213
      %v216 = vadd.f32 %v207, %v214
      %v217 = vadd.f32 %v208, %v214
      %218 = vst [vmem:[#allocation9] sm:$0xff] %v216
      %219 = vst [vmem:[#allocation9 + $0x8] sm:$0xff] %v217
    $region33: #{tpu_custom_call.1} parent=1 // pred_fallthru
      _
    // Predicated region
    $region34: #{tpu_custom_call.1} parent=1 // pred_check
      _
    $region35: #{tpu_custom_call.1} parent=1 // pred_check_branch
      %221 = sbr.rel (0) target = $region37
    $region36: #{tpu_custom_call.1} parent=1 // pred_region
      %s223 = ssub.s32 256, 256
      %224 = vsyncadd [#allocation6], %s223
      %s225 = sshll.u32 [#allocation9], 4
      %s226 = int_to_ptr.vmem [resolvable:$true] %s225
      %231 = dma.vmem_to_hbm [thread:$0]  %s226, 256, %s4, [#allocation6], 128, 128, 8
    $region37: #{tpu_custom_call.1} parent=1 // pred_fallthru
      _
    // Predicated region
    $region38: #{tpu_custom_call.1} parent=1 // pred_check
      _
    $region39: #{tpu_custom_call.1} parent=1 // pred_check_branch
      %233 = sbr.rel (0) target = $region41
    $region40: #{tpu_custom_call.1} parent=1 // pred_region
      %234 = dma.done [#allocation6], 256
    $region41: #{tpu_custom_call.1} parent=1 // pred_fallthru
      _
    %235 = vsyncpa [#allocation5], 1
    %236 = vsyncpa [#allocation8], 1
    %237 = vsyncpa [#allocation6], 1

</llo_original>
